<compile_context>
chip_gen: v7x
topology: tpu7x:2x2x1
jax: 0.10.0
libtpu: 0.0.40
codegen_flags: <defaults>
</compile_context>

<pallas_src>
import functools
from math import sqrt

import jax
import jax.numpy as jnp
import numpy as np
from jax import lax
from jax.experimental import pallas as pl
from jax.experimental.pallas import tpu as pltpu


def make_pos_encoding(num_hiddens, max_len=12):
    """Same construction as PositionEncoding.__init__ (shape (max_len, num_hiddens))."""
    pos = np.zeros((max_len, num_hiddens), dtype=np.float32)
    X = (np.arange(max_len, dtype=np.float32).reshape(-1, 1)
         / np.power(10000.0,
                    np.arange(0, num_hiddens, 2, dtype=np.float32) / num_hiddens))
    pos[:, 0::2] = np.sin(X)
    pos[:, 1::2] = np.cos(X)
    return jnp.asarray(pos)


def _self_attention_kernel(cutoff_ref, x_ref, pos_ref, wqkv_ref, o_ref,
                           *, dk, dv, norm):
    batch, n, dq = x_ref.shape
    cutoff = cutoff_ref[0]                                           # SMEM scalar

    # additive sinusoidal position encoding (broadcast over batch)
    xp = x_ref[...] + pos_ref[...][None, :, :]                       # (B, n, dq)

    # fused Q/K/V projection: single (B*n, dq) @ (dq, 2*dk+dv) MXU matmul
    x2d = xp.reshape(batch * n, dq).astype(wqkv_ref.dtype)
    qkv = jnp.dot(x2d, wqkv_ref[...],
                  preferred_element_type=jnp.float32)                # (B*n, 2dk+dv)
    qkv = qkv.reshape(batch, n, 2 * dk + dv)
    q = qkv[:, :, :dk]
    k = qkv[:, :, dk:2 * dk]
    v = qkv[:, :, 2 * dk:]

    # scaled attention scores, contracting the feature axis of both q and k
    # (no explicit K transpose through the XLU).
    s = lax.dot_general(q, k,
                        dimension_numbers=(((2,), (2,)), ((0,), (0,))),
                        preferred_element_type=jnp.float32) * norm   # (B, n, n)

    # key-axis mask:  dist[:, :, cutoff:] = -inf  (large finite avoids NaN rows)
    key_idx = lax.broadcasted_iota(jnp.int32, s.shape, 2)
    s = jnp.where(key_idx >= cutoff, -1e30, s)

    # softmax over keys (f32)
    s = s - jnp.max(s, axis=-1, keepdims=True)
    p = jnp.exp(s)
    p = p / jnp.sum(p, axis=-1, keepdims=True)

    # Fold the query-axis mask (att[:, cutoff:, :] = 0) and the mean over the
    # sequence axis directly into the probabilities:
    #   pooled_p[b, k] = (1/n) * sum_{q < cutoff} p[b, q, k]
    q_idx = lax.broadcasted_iota(jnp.int32, p.shape, 1)
    p = jnp.where(q_idx >= cutoff, 0.0, p)
    pooled_p = jnp.sum(p, axis=1) * (1.0 / n)                        # (B, n)

    # o[b, :] = pooled_p[b, :] @ v[b]  -- tiny, done as VPU mul + sublane reduce
    o = jnp.sum(pooled_p[:, :, None] * v, axis=1)                    # (B, dv)
    o_ref[...] = o.astype(o_ref.dtype)


def self_attention(x, pos, wq_t, wk_t, wv_t, *, mode=0):
    batch, n, dq = x.shape
    dk = wq_t.shape[1]
    dv = wv_t.shape[1]
    if mode == 0:
        cutoff = 5
    elif mode == 1:
        cutoff = 7
    else:
        cutoff = n  # no masking
    cutoff_arr = jnp.array([cutoff], dtype=jnp.int32)

    # fused, pre-transposed projection weights: (dq, 2*dk + dv)
    w_qkv = jnp.concatenate([wq_t, wk_t, wv_t], axis=1)
    # TODO(synk): on v6e/v7x, casting w_qkv (and x+pos) to bfloat16 before the
    # MXU matmuls (keeping f32 accumulation / softmax) halves operand traffic;
    # kept f32 here so v5e stays optimal and results match the f32 reference.

    norm = 1.0 / sqrt(dk)
    kernel = functools.partial(_self_attention_kernel, dk=dk, dv=dv, norm=norm)

    return pl.pallas_call(
        kernel,
        out_shape=jax.ShapeDtypeStruct((batch, dv), jnp.float32),
        grid_spec=pltpu.PrefetchScalarGridSpec(
            num_scalar_prefetch=1,                    # cutoff -> SMEM scalar
            grid=(1,),                                # single step: whole batch
            in_specs=[
                pl.BlockSpec((batch, n, dq), lambda i, c: (0, 0, 0)),   # x
                pl.BlockSpec((n, dq), lambda i, c: (0, 0)),             # pos
                pl.BlockSpec((dq, 2 * dk + dv), lambda i, c: (0, 0)),   # fused W
            ],
            out_specs=pl.BlockSpec((batch, dv), lambda i, c: (0, 0)),
        ),
        compiler_params=pltpu.CompilerParams(
            dimension_semantics=("arbitrary",)),
    )(cutoff_arr, x, pos, w_qkv)


def reference(x, pos, wq_t, wk_t, wv_t, mode=0):
    """Pure-JAX reference matching the PyTorch forward."""
    n = x.shape[1]
    dk = wq_t.shape[1]
    cutoff = 5 if mode == 0 else (7 if mode == 1 else n)
    xp = x + pos[None]
    q = xp @ wq_t
    k = xp @ wk_t
    v = xp @ wv_t
    dist = jnp.einsum("bqd,bkd->bqk", q, k) / sqrt(dk)
    key_idx = jnp.arange(n)
    dist = jnp.where(key_idx[None, None, :] >= cutoff, -jnp.inf, dist)
    p = jax.nn.softmax(dist, axis=-1)
    att = jnp.einsum("bqk,bkv->bqv", p, v)
    att = jnp.where(key_idx[None, :, None] >= cutoff, 0.0, att)
    return att.mean(axis=1)


if __name__ == "__main__":
    batch, n, dim_q, dim_k, dim_v = 2, 8, 32, 32, 32
    assert n <= 12  # PositionEncoding max_len=12

    key = jax.random.PRNGKey(0)
    kx, kq, kk, kv = jax.random.split(key, 4)
    x = jax.random.normal(kx, (batch, n, dim_q), jnp.float32)

    # nn.Linear(dim_q, dim_k, bias=False): weight (out, in), init U(-1/sqrt(in), 1/sqrt(in))
    bound = 1.0 / sqrt(dim_q)
    wq = jax.random.uniform(kq, (dim_k, dim_q), jnp.float32, -bound, bound)
    wk = jax.random.uniform(kk, (dim_k, dim_q), jnp.float32, -bound, bound)
    wv = jax.random.uniform(kv, (dim_v, dim_q), jnp.float32, -bound, bound)

    pos = make_pos_encoding(dim_q, max_len=12)[:n]

    out = self_attention(x, pos, wq.T, wk.T, wv.T, mode=0)
    out = jax.block_until_ready(out)

    ref = reference(x, pos, wq.T, wk.T, wv.T, mode=0)
    np.testing.assert_allclose(np.asarray(out), np.asarray(ref), rtol=1e-5, atol=1e-5)

    # also exercise a second mode through the same compiled kernel (SMEM scalar)
    out1 = jax.block_until_ready(self_attention(x, pos, wq.T, wk.T, wv.T, mode=1))
    ref1 = reference(x, pos, wq.T, wk.T, wv.T, mode=1)
    np.testing.assert_allclose(np.asarray(out1), np.asarray(ref1), rtol=1e-5, atol=1e-5)

    print("KERNEL_OK")
</pallas_src>

<mosaic_0001>
module attributes {stable_mosaic.version = 11 : i64} {
  func.func @_self_attention_kernel(%arg0: i32, %arg1: memref<1xi32, #tpu.memory_space<smem>>, %arg2: memref<2x8x32xf32, #tpu.memory_space<vmem>>, %arg3: memref<8x32xf32, #tpu.memory_space<vmem>>, %arg4: memref<32x96xf32, #tpu.memory_space<vmem>>, %arg5: memref<2x32xf32, #tpu.memory_space<vmem>>) attributes {dimension_semantics = [#tpu.dimension_semantics<arbitrary>], iteration_bounds = array<i64: 1>, scalar_prefetch = 1 : i64, scratch_operands = 0 : i64, tpu.core_type = #tpu.core_type<tc>, window_params = [{pipeline_mode = #tpu.pipeline_mode<synchronous>, transform_indices = @transform_0, window_bounds = array<i64: 2, 8, 32>}, {pipeline_mode = #tpu.pipeline_mode<synchronous>, transform_indices = @transform_1, window_bounds = array<i64: 8, 32>}, {pipeline_mode = #tpu.pipeline_mode<synchronous>, transform_indices = @transform_2, window_bounds = array<i64: 32, 96>}, {pipeline_mode = #tpu.pipeline_mode<synchronous>, transform_indices = @transform_3, window_bounds = array<i64: 2, 32>}]} {
    %c0 = arith.constant 0 : index
    %0 = memref.load %arg1[%c0] : memref<1xi32, #tpu.memory_space<smem>>
    %c0_0 = arith.constant 0 : index
    %c0_1 = arith.constant 0 : index
    %c0_2 = arith.constant 0 : index
    %1 = vector.load %arg2[%c0_0, %c0_1, %c0_2] : memref<2x8x32xf32, #tpu.memory_space<vmem>>, vector<2x8x32xf32>
    %c0_3 = arith.constant 0 : index
    %c0_4 = arith.constant 0 : index
    %2 = vector.load %arg3[%c0_3, %c0_4] : memref<8x32xf32, #tpu.memory_space<vmem>>, vector<8x32xf32>
    %3 = vector.shape_cast %2 : vector<8x32xf32> to vector<1x8x32xf32>
    %4 = vector.broadcast %3 : vector<1x8x32xf32> to vector<2x8x32xf32>
    %5 = arith.addf %1, %4 : vector<2x8x32xf32>
    %6 = vector.shape_cast %5 : vector<2x8x32xf32> to vector<16x32xf32>
    %c0_5 = arith.constant 0 : index
    %c0_6 = arith.constant 0 : index
    %7 = vector.load %arg4[%c0_5, %c0_6] : memref<32x96xf32, #tpu.memory_space<vmem>>, vector<32x96xf32>
    %cst = arith.constant dense<0.000000e+00> : vector<16x96xf32>
    %8 = tpu.matmul %6, %7, %cst {dimension_numbers = #tpu.dot_dimension_numbers<[1], [0], [0], [1], [0, 0, 1, 1], [], []>} : vector<16x32xf32>, vector<32x96xf32>, vector<16x96xf32> -> vector<16x96xf32>
    %9 = vector.shape_cast %8 : vector<16x96xf32> to vector<2x8x96xf32>
    %10 = vector.extract_strided_slice %9 {offsets = [0, 0, 0], sizes = [2, 8, 32], strides = [1, 1, 1]} : vector<2x8x96xf32> to vector<2x8x32xf32>
    %11 = vector.extract_strided_slice %9 {offsets = [0, 0, 32], sizes = [2, 8, 32], strides = [1, 1, 1]} : vector<2x8x96xf32> to vector<2x8x32xf32>
    %12 = vector.extract_strided_slice %9 {offsets = [0, 0, 64], sizes = [2, 8, 32], strides = [1, 1, 1]} : vector<2x8x96xf32> to vector<2x8x32xf32>
    %cst_7 = arith.constant dense<0.000000e+00> : vector<2x8x8xf32>
    %13 = tpu.matmul %10, %11, %cst_7 {dimension_numbers = #tpu.dot_dimension_numbers<[2], [2], [1], [1], [0, 0, 0, 1, 1, 1], [0], [0]>} : vector<2x8x32xf32>, vector<2x8x32xf32>, vector<2x8x8xf32> -> vector<2x8x8xf32>
    %cst_8 = arith.constant 0.176776692 : f32
    %14 = vector.broadcast %cst_8 : f32 to vector<2x8x8xf32>
    %15 = arith.mulf %13, %14 : vector<2x8x8xf32>
    %16 = tpu.iota {dimensions = array<i32: 2>} : vector<2x8x8xi32>
    %17 = vector.broadcast %0 : i32 to vector<2x8x8xi32>
    %18 = arith.cmpi sge, %16, %17 : vector<2x8x8xi32>
    %cst_9 = arith.constant -1.000000e+30 : f32
    %19 = vector.broadcast %cst_9 : f32 to vector<2x8x8xf32>
    %20 = arith.select %18, %19, %15 : vector<2x8x8xi1>, vector<2x8x8xf32>
    %cst_10 = arith.constant dense<0xFF800000> : vector<2x8xf32>
    %21 = vector.multi_reduction <maximumf>, %20, %cst_10 [2] : vector<2x8x8xf32> to vector<2x8xf32>
    %22 = vector.shape_cast %21 : vector<2x8xf32> to vector<2x8x1xf32>
    %23 = vector.broadcast %22 : vector<2x8x1xf32> to vector<2x8x8xf32>
    %24 = arith.subf %20, %23 : vector<2x8x8xf32>
    %25 = math.exp %24 : vector<2x8x8xf32>
    %cst_11 = arith.constant dense<0.000000e+00> : vector<2x8xf32>
    %26 = vector.multi_reduction <add>, %25, %cst_11 [2] : vector<2x8x8xf32> to vector<2x8xf32>
    %27 = vector.shape_cast %26 : vector<2x8xf32> to vector<2x8x1xf32>
    %28 = vector.broadcast %27 : vector<2x8x1xf32> to vector<2x8x8xf32>
    %29 = arith.divf %25, %28 : vector<2x8x8xf32>
    %30 = tpu.iota {dimensions = array<i32: 1>} : vector<2x8x8xi32>
    %31 = vector.broadcast %0 : i32 to vector<2x8x8xi32>
    %32 = arith.cmpi sge, %30, %31 : vector<2x8x8xi32>
    %cst_12 = arith.constant 0.000000e+00 : f32
    %33 = vector.broadcast %cst_12 : f32 to vector<2x8x8xf32>
    %34 = arith.select %32, %33, %29 : vector<2x8x8xi1>, vector<2x8x8xf32>
    %cst_13 = arith.constant dense<0.000000e+00> : vector<2x8xf32>
    %35 = vector.multi_reduction <add>, %34, %cst_13 [1] : vector<2x8x8xf32> to vector<2x8xf32>
    %cst_14 = arith.constant 1.250000e-01 : f32
    %36 = vector.broadcast %cst_14 : f32 to vector<2x8xf32>
    %37 = arith.mulf %35, %36 : vector<2x8xf32>
    %38 = vector.shape_cast %37 : vector<2x8xf32> to vector<2x8x1xf32>
    %39 = vector.broadcast %38 : vector<2x8x1xf32> to vector<2x8x32xf32>
    %40 = arith.mulf %39, %12 : vector<2x8x32xf32>
    %cst_15 = arith.constant dense<0.000000e+00> : vector<2x32xf32>
    %41 = vector.multi_reduction <add>, %40, %cst_15 [1] : vector<2x8x32xf32> to vector<2x32xf32>
    %c0_16 = arith.constant 0 : index
    %c0_17 = arith.constant 0 : index
    %42 = vector.load %arg5[%c0_16, %c0_17] : memref<2x32xf32, #tpu.memory_space<vmem>>, vector<2x32xf32>
    tpu.vector_store %arg5[%c0_16, %c0_17], %41 {strides = array<i32>} : memref<2x32xf32, #tpu.memory_space<vmem>>, vector<2x32xf32>,
    return
  }
  func.func @transform_0(%arg0: i32, %arg1: memref<1xi32, #tpu.memory_space<smem>>) -> (i32, i32, i32) {
    %c0_i32 = arith.constant 0 : i32
    %c0_i32_0 = arith.constant 0 : i32
    %c0_i32_1 = arith.constant 0 : i32
    %c0_i32_2 = arith.constant 0 : i32
    return %c0_i32, %c0_i32_0, %c0_i32_1 : i32, i32, i32
  }
  func.func @transform_1(%arg0: i32, %arg1: memref<1xi32, #tpu.memory_space<smem>>) -> (i32, i32) {
    %c0_i32 = arith.constant 0 : i32
    %c0_i32_0 = arith.constant 0 : i32
    %c0_i32_1 = arith.constant 0 : i32
    return %c0_i32, %c0_i32_0 : i32, i32
  }
  func.func @transform_2(%arg0: i32, %arg1: memref<1xi32, #tpu.memory_space<smem>>) -> (i32, i32) {
    %c0_i32 = arith.constant 0 : i32
    %c0_i32_0 = arith.constant 0 : i32
    %c0_i32_1 = arith.constant 0 : i32
    return %c0_i32, %c0_i32_0 : i32, i32
  }
  func.func @transform_3(%arg0: i32, %arg1: memref<1xi32, #tpu.memory_space<smem>>) -> (i32, i32) {
    %c0_i32 = arith.constant 0 : i32
    %c0_i32_0 = arith.constant 0 : i32
    %c0_i32_1 = arith.constant 0 : i32
    return %c0_i32, %c0_i32_0 : i32, i32
  }
}

</mosaic_0001>

<llo_original>
// kernel: tpu_custom_call.1
$region0: #{tpu_custom_call.1}
  #allocation0 [shape = 'u32[]', space=smem, size = 0x4, offset = 0x4, fixed_abs, tag = 'smem constant byte address 0x4 - core index']
  #allocation1 [shape = 'u32[144,128]{1,0:T(1,128)}', space=vmem, size = 0x12000, scoped, tag = 'internal scratch']
  #allocation2 [shape = 's32[1]{0}', space=sflag, size = 0x4, scoped, tag = 'scoped memory for tpu_custom_call.1']
  #allocation3 [shape = 's32[1]{0:T(128)S(6)}', space=smem, size = 0x200, scoped, tag = 'prefetched SMEM operand 0']
  %s0 = inlined_call_operand.<no memory space> [shape: s32[1], index: 0, kind: input, shape index: {}]
  %s1 = inlined_call_operand.hbm [shape: f32[2,8,32], index: 1, kind: input, shape index: {}]
  %s2 = inlined_call_operand.hbm [shape: f32[8,32], index: 2, kind: input, shape index: {}]
  %s3 = inlined_call_operand.hbm [shape: f32[32,96], index: 3, kind: input, shape index: {}]
  %s4 = inlined_call_operand.hbm [shape: f32[2,32], index: 4, kind: output, shape index: {}]
  %s5 = sld [smem:[#allocation0]]
  $region34: #{tpu_custom_call.1} parent=0
    _
  %s7 = ssub.s32 1, %s5
  %s8 = scalar_select 0, %s7, %s5
  %9 = sst [smem:[#allocation3]] %s0
  $region1: #{tpu_custom_call.1} parent=0
    #allocation4 [shape = 'u8[8192]{0}', space=vmem, size = 0x2000, scoped, tag = 'input window, operand 1, single buffered']
    #allocation5 [shape = 's32[1]{0}', space=sflag, size = 0x4, scoped, tag = 'scoped memory for tpu_custom_call.1']
    #allocation6 [shape = 's32[1]{0}', space=sflag, size = 0x4, scoped, tag = 'scoped memory for tpu_custom_call.1']
    #allocation7 [shape = 'u8[4096]{0}', space=vmem, size = 0x1000, scoped, tag = 'input window, operand 2, single buffered']
    #allocation8 [shape = 's32[1]{0}', space=sflag, size = 0x4, scoped, tag = 'scoped memory for tpu_custom_call.1']
    #allocation9 [shape = 'u8[16384]{0}', space=vmem, size = 0x4000, scoped, tag = 'input window, operand 3, single buffered']
    #allocation10 [shape = 'u8[1024]{0}', space=vmem, size = 0x400, scoped, tag = 'output window, operand 0, single buffered']
    %10 = vsyncpa [#allocation5], 0
    %11 = vsyncpa [#allocation8], 0
    %12 = vsyncpa [#allocation6], 0
    // Predicated region
    $region2: #{tpu_custom_call.1} parent=1 // pred_check
      _
    $region3: #{tpu_custom_call.1} parent=1 // pred_check_branch
      %14 = sbr.rel (0) target = $region5
    $region4: #{tpu_custom_call.1} parent=1 // pred_region
      %s16 = ssub.s32 256, 256
      %17 = vsyncadd [#allocation5], %s16
      %s18 = sshll.u32 [#allocation4], 4
      %s19 = int_to_ptr.vmem [resolvable:$true] %s18
      %24 = dma.hbm_to_vmem [thread:$0]  %s1, 256, %s19, [#allocation5], 128, 128, 8
    $region5: #{tpu_custom_call.1} parent=1 // pred_fallthru
      _
    // Predicated region
    $region6: #{tpu_custom_call.1} parent=1 // pred_check
      _
    $region7: #{tpu_custom_call.1} parent=1 // pred_check_branch
      %26 = sbr.rel (0) target = $region9
    $region8: #{tpu_custom_call.1} parent=1 // pred_region
      %s28 = ssub.s32 128, 128
      %29 = vsyncadd [#allocation8], %s28
      %s31 = sshll.u32 [#allocation7], 4
      %s32 = int_to_ptr.vmem [resolvable:$true] %s31
      %34 = dma.hbm_to_vmem [thread:$0]  %s2, 128, %s32, [#allocation8]
    $region9: #{tpu_custom_call.1} parent=1 // pred_fallthru
      _
    // Predicated region
    $region10: #{tpu_custom_call.1} parent=1 // pred_check
      _
    $region11: #{tpu_custom_call.1} parent=1 // pred_check_branch
      %36 = sbr.rel (0) target = $region13
    $region12: #{tpu_custom_call.1} parent=1 // pred_region
      %s38 = ssub.s32 512, 512
      %39 = vsyncadd [#allocation8], %s38
      %s40 = sshll.u32 [#allocation9], 4
      %s41 = int_to_ptr.vmem [resolvable:$true] %s40
      %46 = dma.hbm_to_vmem [thread:$0]  %s3, 512, %s41, [#allocation8], 128, 128, 8
    $region13: #{tpu_custom_call.1} parent=1 // pred_fallthru
      _
    // Predicated region
    $region14: #{tpu_custom_call.1} parent=1 // pred_check
      _
    $region15: #{tpu_custom_call.1} parent=1 // pred_check_branch
      %48 = sbr.rel (0) target = $region17
    $region16: #{tpu_custom_call.1} parent=1 // pred_region
      %49 = dma.done [#allocation5], 256
    $region17: #{tpu_custom_call.1} parent=1 // pred_fallthru
      _
    // Predicated region
    $region18: #{tpu_custom_call.1} parent=1 // pred_check
      _
    $region19: #{tpu_custom_call.1} parent=1 // pred_check_branch
      %51 = sbr.rel (0) target = $region21
    $region20: #{tpu_custom_call.1} parent=1 // pred_region
      %52 = dma.done [#allocation8], 128
    $region21: #{tpu_custom_call.1} parent=1 // pred_fallthru
      _
    // Predicated region
    $region22: #{tpu_custom_call.1} parent=1 // pred_check
      _
    $region23: #{tpu_custom_call.1} parent=1 // pred_check_branch
      %54 = sbr.rel (0) target = $region25
    $region24: #{tpu_custom_call.1} parent=1 // pred_region
      %55 = dma.done [#allocation8], 512
    $region25: #{tpu_custom_call.1} parent=1 // pred_fallthru
      _
    %s56 = sld [smem:[#allocation3]]
    %v57 = vld [vmem:[#allocation4] sm:$0xff]
    %v58 = vld [vmem:[#allocation4 + $0x8] sm:$0xff]
    %v59 = vld [vmem:[#allocation7] sm:$0xff]
    %v60 = vadd.f32 %v57, %v59
    %v61 = vadd.f32 %v58, %v59
    %v62 = vld [vmem:[#allocation9] sm:$0xff]
    %v63 = vld [vmem:[#allocation9 + $0x8] sm:$0xff]
    %v64 = vld [vmem:[#allocation9 + $0x10] sm:$0xff]
    %v65 = vld [vmem:[#allocation9 + $0x18] sm:$0xff]
    %vm66 = vcmask 261120
    %v68 = vsel %vm66, %v60, 0
    %v71 = vsel %vm66, %v61, 0
    %73 = vmatprep.subr.mxu0 0.0
    %74 = vmatpush1.msra.mxu0 %v62
    %75 = vmatprep.subr.mxu0 0.0
    %76 = vmatpush1.msra.mxu0 %v63
    %77 = vmatprep.subr.mxu0 0.0
    %78 = vmatpush1.msra.mxu0 %v64
    %79 = vmatprep.subr.mxu0 0.0
    %80 = vmatpush1.msra.mxu0 %v65
    %81 = vmatprep.subr.mxu0 0.0
    %82 = vmatpush1.msra.mxu0 0.0
    %83 = vmatprep.subr.mxu0 0.0
    %84 = vmatpush1.msra.mxu0 0.0
    %85 = vmatprep.subr.mxu0 0.0
    %86 = vmatpush1.msra.mxu0 0.0
    %87 = vmatprep.subr.mxu0 0.0
    %88 = vmatpush1.msra.mxu0 0.0
    %89 = vmatprep.subr.mxu0 0.0
    %90 = vmatpush1.msra.mxu0 0.0
    %91 = vmatprep.subr.mxu0 0.0
    %92 = vmatpush1.msra.mxu0 0.0
    %93 = vmatprep.subr.mxu0 0.0
    %94 = vmatpush1.msra.mxu0 0.0
    %95 = vmatprep.subr.mxu0 0.0
    %96 = vmatpush1.msra.mxu0 0.0
    %97 = vmatprep.subr.mxu0 0.0
    %98 = vmatpush1.msra.mxu0 0.0
    %99 = vmatprep.subr.mxu0 0.0
    %100 = vmatpush1.msra.mxu0 0.0
    %101 = vmatprep.subr.mxu0 0.0
    %102 = vmatpush1.msra.mxu0 0.0
    %103 = vmatprep.subr.mxu0 0.0
    %104 = vmatpush1.msra.mxu0 0.0
    %105 = vmatprep.subr.mxu0 0.0
    %106 = vmatpush1.msra.mxu0 0.0
    %107 = vmatprep.subr.mxu0 0.0
    %108 = vmatpush1.msra.mxu0 0.0
    %109 = vmatprep.subr.mxu0 0.0
    %110 = vmatpush1.msra.mxu0 0.0
    %111 = vmatprep.subr.mxu0 0.0
    %112 = vmatpush1.msra.mxu0 0.0
    %113 = vmatprep.subr.mxu0 0.0
    %114 = vmatpush1.msra.mxu0 0.0
    %115 = vmatprep.subr.mxu0 0.0
    %116 = vmatpush1.msra.mxu0 0.0
    %117 = vmatprep.subr.mxu0 0.0
    %118 = vmatpush1.msra.mxu0 0.0
    %119 = vmatprep.subr.mxu0 0.0
    %120 = vmatpush1.msra.mxu0 0.0
    %121 = vmatprep.subr.mxu0 0.0
    %122 = vmatpush1.msra.mxu0 0.0
    %123 = vmatprep.subr.mxu0 0.0
    %124 = vmatpush1.msra.mxu0 0.0
    %125 = vmatprep.subr.mxu0 0.0
    %126 = vmatpush1.msra.mxu0 0.0
    %127 = vmatprep.subr.mxu0 0.0
    %128 = vmatpush1.msra.mxu0 0.0
    %129 = vmatprep.subr.mxu0 0.0
    %130 = vmatpush1.msra.mxu0 0.0
    %131 = vmatprep.subr.mxu0 0.0
    %132 = vmatpush1.msra.mxu0 0.0
    %133 = vmatprep.subr.mxu0 0.0
    %134 = vmatpush1.msra.mxu0 0.0
    %135 = vmatprep.subr.mxu0 0.0
    %136 = vmatpush1.msra.mxu0 0.0
    %137 = vmatprep.mubr.f32.mxu0 0.0
    %138 = vmatmul.mubr.f32.gmra.mrb[0].mxu0 %v68
    %v139 = vpop.f32.mrb[0].mxu0
    %v140 = vadd.f32 0.0, %v139
    %v141 = vpop.f32.mrb[0].mxu0
    %142 = vmatprep.mubr.f32.mxu0 0.0
    %143 = vmatmul.mubr.f32.gmra.mrb[0].mxu0 %v71
    %v144 = vpop.f32.mrb[0].mxu0
    %v145 = vadd.f32 0.0, %v144
    %v146 = vpop.f32.mrb[0].mxu0
    %147 = vdwg.mxu0
    %149 = vrot.lane.b32.xlu0 %v140, 96
    %v150 = vpop.permute.xlu0 %149
    %v151 = vsel %vm66, %v140, 0
    %v153 = vsel %vm66, %v150, 0
    %155 = vmatprep.subr.mxu0 0.0
    %156 = vmatpush1.xpose.msra.mxu0 %v153
    %157 = vmatprep.subr.mxu0 0.0
    %158 = vmatpush1.xpose.msra.mxu0 0.0
    %159 = vmatprep.subr.mxu0 0.0
    %160 = vmatpush1.xpose.msra.mxu0 0.0
    %161 = vmatprep.subr.mxu0 0.0
    %162 = vmatpush1.xpose.msra.mxu0 0.0
    %163 = vmatprep.subr.mxu0 0.0
    %164 = vmatpush1.xpose.msra.mxu0 0.0
    %165 = vmatprep.subr.mxu0 0.0
    %166 = vmatpush1.xpose.msra.mxu0 0.0
    %167 = vmatprep.subr.mxu0 0.0
    %168 = vmatpush1.xpose.msra.mxu0 0.0
    %169 = vmatprep.subr.mxu0 0.0
    %170 = vmatpush1.xpose.msra.mxu0 0.0
    %171 = vmatprep.subr.mxu0 0.0
    %172 = vmatpush1.xpose.msra.mxu0 0.0
    %173 = vmatprep.subr.mxu0 0.0
    %174 = vmatpush1.xpose.msra.mxu0 0.0
    %175 = vmatprep.subr.mxu0 0.0
    %176 = vmatpush1.xpose.msra.mxu0 0.0
    %177 = vmatprep.subr.mxu0 0.0
    %178 = vmatpush1.xpose.msra.mxu0 0.0
    %179 = vmatprep.subr.mxu0 0.0
    %180 = vmatpush1.xpose.msra.mxu0 0.0
    %181 = vmatprep.subr.mxu0 0.0
    %182 = vmatpush1.xpose.msra.mxu0 0.0
    %183 = vmatprep.subr.mxu0 0.0
    %184 = vmatpush1.xpose.msra.mxu0 0.0
    %185 = vmatprep.subr.mxu0 0.0
    %186 = vmatpush1.xpose.msra.mxu0 0.0
    %187 = vmatprep.subr.mxu0 0.0
    %188 = vmatpush1.xpose.msra.mxu0 0.0
    %189 = vmatprep.subr.mxu0 0.0
    %190 = vmatpush1.xpose.msra.mxu0 0.0
    %191 = vmatprep.subr.mxu0 0.0
    %192 = vmatpush1.xpose.msra.mxu0 0.0
    %193 = vmatprep.subr.mxu0 0.0
    %194 = vmatpush1.xpose.msra.mxu0 0.0
    %195 = vmatprep.subr.mxu0 0.0
    %196 = vmatpush1.xpose.msra.mxu0 0.0
    %197 = vmatprep.subr.mxu0 0.0
    %198 = vmatpush1.xpose.msra.mxu0 0.0
    %199 = vmatprep.subr.mxu0 0.0
    %200 = vmatpush1.xpose.msra.mxu0 0.0
    %201 = vmatprep.subr.mxu0 0.0
    %202 = vmatpush1.xpose.msra.mxu0 0.0
    %203 = vmatprep.subr.mxu0 0.0
    %204 = vmatpush1.xpose.msra.mxu0 0.0
    %205 = vmatprep.subr.mxu0 0.0
    %206 = vmatpush1.xpose.msra.mxu0 0.0
    %207 = vmatprep.subr.mxu0 0.0
    %208 = vmatpush1.xpose.msra.mxu0 0.0
    %209 = vmatprep.subr.mxu0 0.0
    %210 = vmatpush1.xpose.msra.mxu0 0.0
    %211 = vmatprep.subr.mxu0 0.0
    %212 = vmatpush1.xpose.msra.mxu0 0.0
    %213 = vmatprep.subr.mxu0 0.0
    %214 = vmatpush1.xpose.msra.mxu0 0.0
    %215 = vmatprep.subr.mxu0 0.0
    %216 = vmatpush1.xpose.msra.mxu0 0.0
    %217 = vmatprep.subr.mxu0 0.0
    %218 = vmatpush1.xpose.msra.mxu0 0.0
    %219 = vmatprep.mubr.f32.mxu0 0.0
    %220 = vmatmul.mubr.f32.gmra.mrb[0].mxu0 %v151
    %v221 = vpop.f32.mrb[0].mxu0
    %v222 = vadd.f32 0.0, %v221
    %v223 = vpop.f32.mrb[0].mxu0
    %224 = vdwg.mxu0
    %226 = vrot.lane.b32.xlu0 %v145, 96
    %v227 = vpop.permute.xlu0 %226
    %v228 = vsel %vm66, %v145, 0
    %v230 = vsel %vm66, %v227, 0
    %232 = vmatprep.subr.mxu0 0.0
    %233 = vmatpush1.xpose.msra.mxu0 %v230
    %234 = vmatprep.subr.mxu0 0.0
    %235 = vmatpush1.xpose.msra.mxu0 0.0
    %236 = vmatprep.subr.mxu0 0.0
    %237 = vmatpush1.xpose.msra.mxu0 0.0
    %238 = vmatprep.subr.mxu0 0.0
    %239 = vmatpush1.xpose.msra.mxu0 0.0
    %240 = vmatprep.subr.mxu0 0.0
    %241 = vmatpush1.xpose.msra.mxu0 0.0
    %242 = vmatprep.subr.mxu0 0.0
    %243 = vmatpush1.xpose.msra.mxu0 0.0
    %244 = vmatprep.subr.mxu0 0.0
    %245 = vmatpush1.xpose.msra.mxu0 0.0
    %246 = vmatprep.subr.mxu0 0.0
    %247 = vmatpush1.xpose.msra.mxu0 0.0
    %248 = vmatprep.subr.mxu0 0.0
    %249 = vmatpush1.xpose.msra.mxu0 0.0
    %250 = vmatprep.subr.mxu0 0.0
    %251 = vmatpush1.xpose.msra.mxu0 0.0
    %252 = vmatprep.subr.mxu0 0.0
    %253 = vmatpush1.xpose.msra.mxu0 0.0
    %254 = vmatprep.subr.mxu0 0.0
    %255 = vmatpush1.xpose.msra.mxu0 0.0
    %256 = vmatprep.subr.mxu0 0.0
    %257 = vmatpush1.xpose.msra.mxu0 0.0
    %258 = vmatprep.subr.mxu0 0.0
    %259 = vmatpush1.xpose.msra.mxu0 0.0
    %260 = vmatprep.subr.mxu0 0.0
    %261 = vmatpush1.xpose.msra.mxu0 0.0
    %262 = vmatprep.subr.mxu0 0.0
    %263 = vmatpush1.xpose.msra.mxu0 0.0
    %264 = vmatprep.subr.mxu0 0.0
    %265 = vmatpush1.xpose.msra.mxu0 0.0
    %266 = vmatprep.subr.mxu0 0.0
    %267 = vmatpush1.xpose.msra.mxu0 0.0
    %268 = vmatprep.subr.mxu0 0.0
    %269 = vmatpush1.xpose.msra.mxu0 0.0
    %270 = vmatprep.subr.mxu0 0.0
    %271 = vmatpush1.xpose.msra.mxu0 0.0
    %272 = vmatprep.subr.mxu0 0.0
    %273 = vmatpush1.xpose.msra.mxu0 0.0
    %274 = vmatprep.subr.mxu0 0.0
    %275 = vmatpush1.xpose.msra.mxu0 0.0
    %276 = vmatprep.subr.mxu0 0.0
    %277 = vmatpush1.xpose.msra.mxu0 0.0
    %278 = vmatprep.subr.mxu0 0.0
    %279 = vmatpush1.xpose.msra.mxu0 0.0
    %280 = vmatprep.subr.mxu0 0.0
    %281 = vmatpush1.xpose.msra.mxu0 0.0
    %282 = vmatprep.subr.mxu0 0.0
    %283 = vmatpush1.xpose.msra.mxu0 0.0
    %284 = vmatprep.subr.mxu0 0.0
    %285 = vmatpush1.xpose.msra.mxu0 0.0
    %286 = vmatprep.subr.mxu0 0.0
    %287 = vmatpush1.xpose.msra.mxu0 0.0
    %288 = vmatprep.subr.mxu0 0.0
    %289 = vmatpush1.xpose.msra.mxu0 0.0
    %290 = vmatprep.subr.mxu0 0.0
    %291 = vmatpush1.xpose.msra.mxu0 0.0
    %292 = vmatprep.subr.mxu0 0.0
    %293 = vmatpush1.xpose.msra.mxu0 0.0
    %294 = vmatprep.subr.mxu0 0.0
    %295 = vmatpush1.xpose.msra.mxu0 0.0
    %296 = vmatprep.mubr.f32.mxu0 0.0
    %297 = vmatmul.mubr.f32.gmra.mrb[0].mxu0 %v228
    %v298 = vpop.f32.mrb[0].mxu0
    %v299 = vadd.f32 0.0, %v298
    %v300 = vpop.f32.mrb[0].mxu0
    %301 = vdwg.mxu0
    %v302 = vmul.f32 %v222, 0.17677669
    %v303 = vmul.f32 %v299, 0.17677669
    %v304 = vlaneseq
    %v305 = vand.u32 %v304, 127
    %v306 = vstv %s56
    %vm307 = vcmp.ge.s32.totalorder %v305, %v306
    %v308 = vsel %vm307, -1e+30, %v302
    %v309 = vsel %vm307, -1e+30, %v303
    %vm310 = vcmask 64512
    %v311 = vsel %vm310, %v308, -inf
    %312 = vmax.xlane.f32.xlu0 %v311
    %v313 = vpop.xlane.xlu0 %312
    %v314 = vsel %vm310, %v309, -inf
    %315 = vmax.xlane.f32.xlu0 %v314
    %v316 = vpop.xlane.xlu0 %315
    %v317 = vsub.f32 %v308, %v313
    %v318 = vsub.f32 %v309, %v316
    %v319 = vmul.f32 %v317, 1.442695
    %v320 = vpow.pop %v319
    %v321 = vmul.f32 %v318, 1.442695
    %v322 = vpow.pop %v321
    %v323 = vsel %vm310, %v320, 0.0
    %324 = vadd.xlane.f32.xlu0 %v323
    %v325 = vpop.xlane.xlu0 %324
    %v326 = vsel %vm310, %v322, 0.0
    %327 = vadd.xlane.f32.xlu0 %v326
    %v328 = vpop.xlane.xlu0 %327
    %v329 = vrcp.pop %v325
    %v330 = vmul.f32 %v320, %v329
    %v331 = vrcp.pop %v328
    %v332 = vmul.f32 %v322, %v331
    %v333 = vlaneseq
    %v334 = vshrl.u32 %v333, 7
    %vm335 = vcmp.ge.s32.totalorder %v334, %v306
    %v336 = vsel %vm335, 0.0, %v330
    %v337 = vsel %vm335, 0.0, %v332
    %v338 = vsel %vm310, %v336, 0.0
    %v339 = vrot.slane %v338, 4
    %v340 = vadd.f32 %v338, %v339
    %v341 = vrot.slane %v340, 2
    %v342 = vadd.f32 %v340, %v341
    %v343 = vrot.slane %v342, 1
    %v344 = vadd.f32 %v342, %v343
    %v345 = vsel %vm310, %v337, 0.0
    %v346 = vrot.slane %v345, 4
    %v347 = vadd.f32 %v345, %v346
    %v348 = vrot.slane %v347, 2
    %v349 = vadd.f32 %v347, %v348
    %v350 = vrot.slane %v349, 1
    %v351 = vadd.f32 %v349, %v350
    %v352 = vmul.f32 %v344, 0.125
    %v353 = vmul.f32 %v351, 0.125
    %355 = vbcast.lane.b32.xlu0 %v352, 256
    %v356 = vpop.permute.xlu0 %355
    %358 = vbcast.lane.b32.xlu0 %v353, 256
    %v359 = vpop.permute.xlu0 %358
    %v360 = vmul.f32 %v356, %v140
    %v361 = vmul.f32 %v359, %v145
    %vm362 = vcmask 785920
    %v363 = vsel %vm362, %v360, 0.0
    %v364 = vrot.slane %v363, 4
    %v365 = vadd.f32 %v363, %v364
    %v366 = vrot.slane %v365, 2
    %v367 = vadd.f32 %v365, %v366
    %v368 = vrot.slane %v367, 1
    %v369 = vadd.f32 %v367, %v368
    %v370 = vsel %vm362, %v361, 0.0
    %v371 = vrot.slane %v370, 4
    %v372 = vadd.f32 %v370, %v371
    %v373 = vrot.slane %v372, 2
    %v374 = vadd.f32 %v372, %v373
    %v375 = vrot.slane %v374, 1
    %v376 = vadd.f32 %v374, %v375
    %vm379 = vcmask 1041409
    %v380 = vsel %vm379, %v376, %v369
    %381 = vrot.lane.b32.xlu0 %v380, 64
    %v382 = vpop.permute.xlu0 %381
    %vm384 = vcmask 254976
    %385 = vst.msk [vmem:[#allocation10] sm:$0x3] %vm384, %v382
    // Predicated region
    $region26: #{tpu_custom_call.1} parent=1 // pred_check
      _
    $region27: #{tpu_custom_call.1} parent=1 // pred_check_branch
      %387 = sbr.rel (0) target = $region29
    $region28: #{tpu_custom_call.1} parent=1 // pred_region
      %s389 = ssub.s32 32, 32
      %390 = vsyncadd [#allocation6], %s389
      %s392 = sshll.u32 [#allocation10], 4
      %s393 = int_to_ptr.vmem [resolvable:$true] %s392
      %395 = dma.vmem_to_hbm [thread:$0]  %s393, 32, %s4, [#allocation6]
    $region29: #{tpu_custom_call.1} parent=1 // pred_fallthru
      _
    // Predicated region
    $region30: #{tpu_custom_call.1} parent=1 // pred_check
      _
    $region31: #{tpu_custom_call.1} parent=1 // pred_check_branch
      %397 = sbr.rel (0) target = $region33
    $region32: #{tpu_custom_call.1} parent=1 // pred_region
      %398 = dma.done [#allocation6], 32
    $region33: #{tpu_custom_call.1} parent=1 // pred_fallthru
      _
    %399 = vsyncpa [#allocation5], 1
    %400 = vsyncpa [#allocation8], 1
    %401 = vsyncpa [#allocation6], 1

</llo_original>
